<compile_context>
chip_gen: v6e
topology: v6e:2x2x1
jax: 0.10.0
libtpu: 0.0.40
codegen_flags: <defaults>
</compile_context>

<pallas_src>
import functools
import math

import jax
import jax.numpy as jnp
from jax import lax
from jax.experimental import pallas as pl
from jax.experimental.pallas import tpu as pltpu


def _round_up(x, m):
    return ((x + m - 1) // m) * m


def _decoder_kernel(x_ref, w1_ref, gamma_ref, beta_ref, w2_ref, b2_ref, o_ref,
                    sum_ref, sumsq_ref, scale_ref, shift_ref, *cache_refs,
                    n_rows, eps, approximate_gelu, cache_h):
    phase = pl.program_id(0)        # 0: accumulate batch stats, 1: normalize+emit
    ti = pl.program_id(1)           # BN row-tile index
    n_tiles = pl.num_programs(1)

    # Zero the stats accumulators once, at the very first grid step.
    @pl.when(jnp.logical_and(phase == 0, ti == 0))
    def _init():
        sum_ref[...] = jnp.zeros_like(sum_ref)
        sumsq_ref[...] = jnp.zeros_like(sumsq_ref)

    def matmul1():
        # Linear 1 (emb -> emb) on the MXU, f32 accumulation.  b1 is omitted:
        # the BatchNorm mean subtraction cancels a per-feature bias exactly.
        return jnp.dot(x_ref[...].astype(w1_ref.dtype), w1_ref[...],
                       preferred_element_type=jnp.float32)      # [tile, E] f32

    if cache_h:
        h_cache_ref = cache_refs[0]

        @pl.when(phase == 0)
        def _accumulate():
            h = matmul1()
            h_cache_ref[ti] = h.astype(h_cache_ref.dtype)       # cache for phase 1
            sum_ref[...] = sum_ref[...] + jnp.sum(h, axis=0, keepdims=True)
            sumsq_ref[...] = sumsq_ref[...] + jnp.sum(h * h, axis=0, keepdims=True)
    else:
        # Fallback: recompute h every step (phase 1 re-streams x).
        h_shared = matmul1()

        @pl.when(phase == 0)
        def _accumulate():
            sum_ref[...] = sum_ref[...] + jnp.sum(h_shared, axis=0, keepdims=True)
            sumsq_ref[...] = sumsq_ref[...] + jnp.sum(h_shared * h_shared,
                                                      axis=0, keepdims=True)

    # After the last phase-0 tile, fold BN into a single scale/shift pair.
    @pl.when(jnp.logical_and(phase == 0, ti == n_tiles - 1))
    def _finalize_stats():
        inv_n = jnp.float32(1.0 / n_rows)
        mean = sum_ref[...] * inv_n
        var = sumsq_ref[...] * inv_n - mean * mean               # biased variance
        scale = gamma_ref[...] * lax.rsqrt(var + jnp.float32(eps))
        scale_ref[...] = scale
        shift_ref[...] = beta_ref[...] - mean * scale

    # ---- Phase 1: normalize, GELU, Linear 2, store at true feature width ----
    @pl.when(phase == 1)
    def _emit():
        if cache_h:
            h = h_cache_ref[ti].astype(jnp.float32)
        else:
            h = h_shared
        h_bn = h * scale_ref[...] + shift_ref[...]
        if approximate_gelu:
            # tanh approximation runs on the EUP (frees VALU slots); numerics
            # differ slightly from torch.nn.GELU's default erf form.
            c = math.sqrt(2.0 / math.pi)
            act = 0.5 * h_bn * (1.0 + jnp.tanh(c * (h_bn + 0.044715 * h_bn * h_bn * h_bn)))
        else:
            act = 0.5 * h_bn * (1.0 + lax.erf(h_bn * (1.0 / math.sqrt(2.0))))
        # Dropout(p=0.0) == identity (deterministic forward).
        y = jnp.dot(act.astype(w2_ref.dtype), w2_ref[...],
                    preferred_element_type=jnp.float32)          # [tile, F] f32
        o_ref[...] = (y + b2_ref[...]).astype(o_ref.dtype)


def decoder_forward(node_attr, params, *, block_rows=1024,
                    matmul_dtype=jnp.bfloat16, approximate_gelu=True,
                    eps=1e-5, h_cache_budget_bytes=8 * 1024 * 1024):
    """node_attr: [BN, node_emb] float32 -> [BN, node_feat] float32."""
    w1, gamma, beta, w2, b2 = (params["w1"], params["gamma"], params["beta"],
                               params["w2"], params["b2"])
    bn, emb = node_attr.shape
    feat = w2.shape[1]

    # Row tile: multiple of 8 sublanes; pad BN with zero rows (exact for batch
    # statistics because b1 is dropped -> padded rows give h == 0 exactly).
    tile = _round_up(min(block_rows, _round_up(bn, 8)), 8)
    bn_pad = _round_up(bn, tile)
    n_tiles = bn_pad // tile

    x = node_attr if bn_pad == bn else jnp.pad(node_attr, ((0, bn_pad - bn), (0, 0)))

    # bf16 MXU operands on the perf path (f32 accumulation / f32 BN stats).
    w1c = w1.astype(matmul_dtype)
    w2c = w2.astype(matmul_dtype)

    # h-cache gating: conservative default budget keeps the whole working set
    # comfortably inside every generation's default scoped VMEM limit.
    cache_dtype = matmul_dtype
    cache_bytes = bn_pad * emb * jnp.dtype(cache_dtype).itemsize
    cache_h = cache_bytes <= h_cache_budget_bytes

    scratch_shapes = [
        pltpu.VMEM((1, emb), jnp.float32),   # per-feature sum
        pltpu.VMEM((1, emb), jnp.float32),   # per-feature sum of squares
        pltpu.VMEM((1, emb), jnp.float32),   # folded BN scale
        pltpu.VMEM((1, emb), jnp.float32),   # folded BN shift
    ]
    if cache_h:
        scratch_shapes.append(pltpu.VMEM((n_tiles, tile, emb), cache_dtype))

    if cache_h:
        # During phase 1 keep the x block index pinned to the last phase-0
        # index -> zero redundant x DMAs (x is read from HBM exactly once).
        x_index_map = lambda p, i: ((1 - p) * i + p * (n_tiles - 1), 0)
    else:
        x_index_map = lambda p, i: (i, 0)

    kernel = functools.partial(_decoder_kernel, n_rows=bn, eps=eps,
                               approximate_gelu=approximate_gelu,
                               cache_h=cache_h)

    w_itemsize = jnp.dtype(matmul_dtype).itemsize
    cost = pl.CostEstimate(
        flops=2 * bn_pad * emb * emb * (1 if cache_h else 2)
              + 2 * bn_pad * emb * feat,
        transcendentals=bn_pad * emb,
        bytes_accessed=bn_pad * emb * 4 * (1 if cache_h else 2)
                       + bn_pad * feat * 4
                       + (emb * emb + emb * feat) * w_itemsize,
    )

    out = pl.pallas_call(
        kernel,
        out_shape=jax.ShapeDtypeStruct((bn_pad, feat), node_attr.dtype),
        grid_spec=pltpu.PrefetchScalarGridSpec(
            num_scalar_prefetch=0,
            grid=(2, n_tiles),                                    # (phase, BN tile)
            in_specs=[
                pl.BlockSpec((tile, emb), x_index_map),                # x
                pl.BlockSpec((emb, emb), lambda p, i: (0, 0)),         # w1
                pl.BlockSpec((1, emb), lambda p, i: (0, 0)),           # gamma
                pl.BlockSpec((1, emb), lambda p, i: (0, 0)),           # beta
                pl.BlockSpec((emb, feat), lambda p, i: (0, 0)),        # w2
                pl.BlockSpec((1, feat), lambda p, i: (0, 0)),          # b2
            ],
            # Phase 0 keeps the output block index constant -> no writeback of
            # an uninitialized block; each output tile is written to HBM
            # exactly once, after phase 1 fills it.
            out_specs=pl.BlockSpec((tile, feat), lambda p, i: (i * p, 0)),
            scratch_shapes=scratch_shapes,
        ),
        compiler_params=pltpu.CompilerParams(
            # Both axes are sequential: phase 1 consumes phase 0's statistics.
            dimension_semantics=("arbitrary", "arbitrary")),
        cost_estimate=cost,
    )(x, w1c, gamma, beta, w2c, b2)

    # Only a (cheap) row-prefix slice remains; no column slice since the output
    # is already at the true feature width.
    return out if bn_pad == bn else out[:bn]


def init_params(key, node_embedding_dim, node_feature_dim):
    """Deterministic synthetic init, PyTorch-Linear-style uniform bounds."""
    k1, k2, k3, k4 = jax.random.split(key, 4)
    bound = 1.0 / math.sqrt(node_embedding_dim)
    w1 = jax.random.uniform(k1, (node_embedding_dim, node_embedding_dim),
                            jnp.float32, -bound, bound)
    b1 = jax.random.uniform(k2, (1, node_embedding_dim),
                            jnp.float32, -bound, bound)
    w2 = jax.random.uniform(k3, (node_embedding_dim, node_feature_dim),
                            jnp.float32, -bound, bound)
    b2 = jax.random.uniform(k4, (1, node_feature_dim),
                            jnp.float32, -bound, bound)
    gamma = jnp.ones((1, node_embedding_dim), jnp.float32)   # BN weight init
    beta = jnp.zeros((1, node_embedding_dim), jnp.float32)   # BN bias init
    return {"w1": w1, "b1": b1, "gamma": gamma, "beta": beta,
            "w2": w2, "b2": b2}


def decoder_reference(node_attr, params):
    """Pure-JAX f32 reference of the torch forward (b1 included; it cancels).

    Uses HIGHEST matmul precision so the reference itself is true f32 (XLA's
    default TPU precision would otherwise truncate operands to bf16)."""
    hp = lax.Precision.HIGHEST
    h = jnp.dot(node_attr, params["w1"], precision=hp) + params["b1"]
    mean = jnp.mean(h, axis=0, keepdims=True)
    var = jnp.mean((h - mean) ** 2, axis=0, keepdims=True)
    h = (h - mean) * lax.rsqrt(var + 1e-5)
    h = h * params["gamma"] + params["beta"]
    h = 0.5 * h * (1.0 + lax.erf(h / math.sqrt(2.0)))
    return jnp.dot(h, params["w2"], precision=hp) + params["b2"]


if __name__ == "__main__":
    node_embedding_dim = 128   # node_emb
    node_feature_dim = 32      # node_feat
    num_nodes = 256            # BN = batch * nodes

    key = jax.random.PRNGKey(0)
    k_x, k_p = jax.random.split(key)
    node_attr = jax.random.normal(k_x, (num_nodes, node_embedding_dim),
                                  jnp.float32)
    params = init_params(k_p, node_embedding_dim, node_feature_dim)

    ref = decoder_reference(node_attr, params)

    # 1) f32 / exact-erf path, multi-tile (block_rows=128 -> 2 row tiles),
    #    cached-h phase-1 path.
    out_f32 = decoder_forward(node_attr, params, block_rows=128,
                              matmul_dtype=jnp.float32, approximate_gelu=False)
    out_f32 = jax.block_until_ready(out_f32)
    assert out_f32.shape == (num_nodes, node_feature_dim)
    assert jnp.allclose(out_f32, ref, atol=2e-3, rtol=2e-3), (
        float(jnp.max(jnp.abs(out_f32 - ref))))

    # 2) Performance path: bf16 MXU operands, tanh GELU, cached h.
    out = decoder_forward(node_attr, params, block_rows=128)
    out = jax.block_until_ready(out)
    assert out.shape == (num_nodes, node_feature_dim)
    assert jnp.allclose(out, ref, atol=5e-2, rtol=5e-2), (
        float(jnp.max(jnp.abs(out - ref))))

    # 3) Fallback path (h cache disabled -> phase 1 re-streams x and
    #    recomputes matmul-1), to exercise both kernel variants.
    out_nc = decoder_forward(node_attr, params, block_rows=128,
                             h_cache_budget_bytes=0)
    out_nc = jax.block_until_ready(out_nc)
    assert out_nc.shape == (num_nodes, node_feature_dim)
    assert jnp.allclose(out_nc, ref, atol=5e-2, rtol=5e-2), (
        float(jnp.max(jnp.abs(out_nc - ref))))

    print("KERNEL_OK")
</pallas_src>

<mosaic_0001>
module attributes {stable_mosaic.version = 11 : i64} {
  func.func @_decoder_kernel(%arg0: i32, %arg1: i32, %arg2: memref<128x128xf32, #tpu.memory_space<vmem>>, %arg3: memref<128x128xf32, #tpu.memory_space<vmem>>, %arg4: memref<1x128xf32, #tpu.memory_space<vmem>>, %arg5: memref<1x128xf32, #tpu.memory_space<vmem>>, %arg6: memref<128x32xf32, #tpu.memory_space<vmem>>, %arg7: memref<1x32xf32, #tpu.memory_space<vmem>>, %arg8: memref<128x32xf32, #tpu.memory_space<vmem>>, %arg9: memref<1x128xf32, #tpu.memory_space<vmem>>, %arg10: memref<1x128xf32, #tpu.memory_space<vmem>>, %arg11: memref<1x128xf32, #tpu.memory_space<vmem>>, %arg12: memref<1x128xf32, #tpu.memory_space<vmem>>, %arg13: memref<2x128x128xf32, #tpu.memory_space<vmem>>) attributes {dimension_semantics = [#tpu.dimension_semantics<arbitrary>, #tpu.dimension_semantics<arbitrary>], iteration_bounds = array<i64: 2, 2>, scalar_prefetch = 0 : i64, scratch_operands = 5 : i64, tpu.core_type = #tpu.core_type<tc>, window_params = [{transform_indices = @transform_0, window_bounds = array<i64: 128, 128>}, {pipeline_mode = #tpu.pipeline_mode<synchronous>, transform_indices = @transform_1, window_bounds = array<i64: 128, 128>}, {pipeline_mode = #tpu.pipeline_mode<synchronous>, transform_indices = @transform_2, window_bounds = array<i64: 1, 128>}, {pipeline_mode = #tpu.pipeline_mode<synchronous>, transform_indices = @transform_3, window_bounds = array<i64: 1, 128>}, {pipeline_mode = #tpu.pipeline_mode<synchronous>, transform_indices = @transform_4, window_bounds = array<i64: 128, 32>}, {pipeline_mode = #tpu.pipeline_mode<synchronous>, transform_indices = @transform_5, window_bounds = array<i64: 1, 32>}, {transform_indices = @transform_6, window_bounds = array<i64: 128, 32>}]} {
    %c0_i32 = arith.constant 0 : i32
    %0 = arith.cmpi eq, %arg0, %c0_i32 : i32
    %c0_i32_0 = arith.constant 0 : i32
    %1 = arith.cmpi eq, %arg1, %c0_i32_0 : i32
    %2 = arith.andi %0, %1 : i1
    %3 = arith.extui %2 : i1 to i32
    %c0_i32_1 = arith.constant 0 : i32
    %4 = arith.cmpi ne, %3, %c0_i32_1 : i32
    scf.if %4 {
      %cst = arith.constant 0.000000e+00 : f32
      %16 = vector.broadcast %cst : f32 to vector<1x128xf32>
      %c0 = arith.constant 0 : index
      %c0_8 = arith.constant 0 : index
      %17 = vector.load %arg9[%c0, %c0_8] : memref<1x128xf32, #tpu.memory_space<vmem>>, vector<1x128xf32>
      tpu.vector_store %arg9[%c0, %c0_8], %16 {strides = array<i32>} : memref<1x128xf32, #tpu.memory_space<vmem>>, vector<1x128xf32>,
      %cst_9 = arith.constant 0.000000e+00 : f32
      %18 = vector.broadcast %cst_9 : f32 to vector<1x128xf32>
      %c0_10 = arith.constant 0 : index
      %c0_11 = arith.constant 0 : index
      %19 = vector.load %arg10[%c0_10, %c0_11] : memref<1x128xf32, #tpu.memory_space<vmem>>, vector<1x128xf32>
      tpu.vector_store %arg10[%c0_10, %c0_11], %18 {strides = array<i32>} : memref<1x128xf32, #tpu.memory_space<vmem>>, vector<1x128xf32>,
    } else {
    }
    %c0_i32_2 = arith.constant 0 : i32
    %5 = arith.cmpi eq, %arg0, %c0_i32_2 : i32
    %6 = arith.extui %5 : i1 to i32
    %c0_i32_3 = arith.constant 0 : i32
    %7 = arith.cmpi ne, %6, %c0_i32_3 : i32
    scf.if %7 {
      %c0 = arith.constant 0 : index
      %c0_8 = arith.constant 0 : index
      %16 = vector.load %arg2[%c0, %c0_8] : memref<128x128xf32, #tpu.memory_space<vmem>>, vector<128x128xf32>
      %c0_9 = arith.constant 0 : index
      %c0_10 = arith.constant 0 : index
      %17 = vector.load %arg3[%c0_9, %c0_10] : memref<128x128xf32, #tpu.memory_space<vmem>>, vector<128x128xf32>
      %cst = arith.constant dense<0.000000e+00> : vector<128x128xf32>
      %18 = tpu.matmul %16, %17, %cst {dimension_numbers = #tpu.dot_dimension_numbers<[1], [0], [0], [1], [0, 0, 1, 1], [], []>} : vector<128x128xf32>, vector<128x128xf32>, vector<128x128xf32> -> vector<128x128xf32>
      %19 = arith.index_cast %arg1 : i32 to index
      %c0_11 = arith.constant 0 : index
      %c0_12 = arith.constant 0 : index
      %20 = vector.load %arg13[%19, %c0_11, %c0_12] : memref<2x128x128xf32, #tpu.memory_space<vmem>>, vector<1x128x128xf32>
      %21 = vector.shape_cast %20 : vector<1x128x128xf32> to vector<128x128xf32>
      %22 = vector.shape_cast %18 : vector<128x128xf32> to vector<1x128x128xf32>
      tpu.vector_store %arg13[%19, %c0_11, %c0_12], %22 {strides = array<i32>} : memref<2x128x128xf32, #tpu.memory_space<vmem>>, vector<1x128x128xf32>,
      %c0_13 = arith.constant 0 : index
      %c0_14 = arith.constant 0 : index
      %23 = vector.load %arg9[%c0_13, %c0_14] : memref<1x128xf32, #tpu.memory_space<vmem>>, vector<1x128xf32>
      %cst_15 = arith.constant dense<0.000000e+00> : vector<128xf32>
      %24 = vector.multi_reduction <add>, %18, %cst_15 [0] : vector<128x128xf32> to vector<128xf32>
      %25 = vector.shape_cast %24 : vector<128xf32> to vector<1x128xf32>
      %26 = arith.addf %23, %25 : vector<1x128xf32>
      %c0_16 = arith.constant 0 : index
      %c0_17 = arith.constant 0 : index
      %27 = vector.load %arg9[%c0_16, %c0_17] : memref<1x128xf32, #tpu.memory_space<vmem>>, vector<1x128xf32>
      tpu.vector_store %arg9[%c0_16, %c0_17], %26 {strides = array<i32>} : memref<1x128xf32, #tpu.memory_space<vmem>>, vector<1x128xf32>,
      %c0_18 = arith.constant 0 : index
      %c0_19 = arith.constant 0 : index
      %28 = vector.load %arg10[%c0_18, %c0_19] : memref<1x128xf32, #tpu.memory_space<vmem>>, vector<1x128xf32>
      %29 = arith.mulf %18, %18 : vector<128x128xf32>
      %cst_20 = arith.constant dense<0.000000e+00> : vector<128xf32>
      %30 = vector.multi_reduction <add>, %29, %cst_20 [0] : vector<128x128xf32> to vector<128xf32>
      %31 = vector.shape_cast %30 : vector<128xf32> to vector<1x128xf32>
      %32 = arith.addf %28, %31 : vector<1x128xf32>
      %c0_21 = arith.constant 0 : index
      %c0_22 = arith.constant 0 : index
      %33 = vector.load %arg10[%c0_21, %c0_22] : memref<1x128xf32, #tpu.memory_space<vmem>>, vector<1x128xf32>
      tpu.vector_store %arg10[%c0_21, %c0_22], %32 {strides = array<i32>} : memref<1x128xf32, #tpu.memory_space<vmem>>, vector<1x128xf32>,
    } else {
    }
    %c0_i32_4 = arith.constant 0 : i32
    %8 = arith.cmpi eq, %arg0, %c0_i32_4 : i32
    %c1_i32 = arith.constant 1 : i32
    %9 = arith.cmpi eq, %arg1, %c1_i32 : i32
    %10 = arith.andi %8, %9 : i1
    %11 = arith.extui %10 : i1 to i32
    %c0_i32_5 = arith.constant 0 : i32
    %12 = arith.cmpi ne, %11, %c0_i32_5 : i32
    scf.if %12 {
      %c0 = arith.constant 0 : index
      %c0_8 = arith.constant 0 : index
      %16 = vector.load %arg9[%c0, %c0_8] : memref<1x128xf32, #tpu.memory_space<vmem>>, vector<1x128xf32>
      %cst = arith.constant 3.906250e-03 : f32
      %17 = vector.broadcast %cst : f32 to vector<1x128xf32>
      %18 = arith.mulf %16, %17 : vector<1x128xf32>
      %c0_9 = arith.constant 0 : index
      %c0_10 = arith.constant 0 : index
      %19 = vector.load %arg10[%c0_9, %c0_10] : memref<1x128xf32, #tpu.memory_space<vmem>>, vector<1x128xf32>
      %cst_11 = arith.constant 3.906250e-03 : f32
      %20 = vector.broadcast %cst_11 : f32 to vector<1x128xf32>
      %21 = arith.mulf %19, %20 : vector<1x128xf32>
      %22 = arith.mulf %18, %18 : vector<1x128xf32>
      %23 = arith.subf %21, %22 : vector<1x128xf32>
      %c0_12 = arith.constant 0 : index
      %c0_13 = arith.constant 0 : index
      %24 = vector.load %arg4[%c0_12, %c0_13] : memref<1x128xf32, #tpu.memory_space<vmem>>, vector<1x128xf32>
      %cst_14 = arith.constant 9.99999974E-6 : f32
      %25 = vector.broadcast %cst_14 : f32 to vector<1x128xf32>
      %26 = arith.addf %23, %25 : vector<1x128xf32>
      %27 = math.rsqrt %26 : vector<1x128xf32>
      %28 = arith.mulf %24, %27 : vector<1x128xf32>
      %c0_15 = arith.constant 0 : index
      %c0_16 = arith.constant 0 : index
      %29 = vector.load %arg11[%c0_15, %c0_16] : memref<1x128xf32, #tpu.memory_space<vmem>>, vector<1x128xf32>
      tpu.vector_store %arg11[%c0_15, %c0_16], %28 {strides = array<i32>} : memref<1x128xf32, #tpu.memory_space<vmem>>, vector<1x128xf32>,
      %c0_17 = arith.constant 0 : index
      %c0_18 = arith.constant 0 : index
      %30 = vector.load %arg5[%c0_17, %c0_18] : memref<1x128xf32, #tpu.memory_space<vmem>>, vector<1x128xf32>
      %31 = arith.mulf %18, %28 : vector<1x128xf32>
      %32 = arith.subf %30, %31 : vector<1x128xf32>
      %c0_19 = arith.constant 0 : index
      %c0_20 = arith.constant 0 : index
      %33 = vector.load %arg12[%c0_19, %c0_20] : memref<1x128xf32, #tpu.memory_space<vmem>>, vector<1x128xf32>
      tpu.vector_store %arg12[%c0_19, %c0_20], %32 {strides = array<i32>} : memref<1x128xf32, #tpu.memory_space<vmem>>, vector<1x128xf32>,
    } else {
    }
    %c1_i32_6 = arith.constant 1 : i32
    %13 = arith.cmpi eq, %arg0, %c1_i32_6 : i32
    %14 = arith.extui %13 : i1 to i32
    %c0_i32_7 = arith.constant 0 : i32
    %15 = arith.cmpi ne, %14, %c0_i32_7 : i32
    scf.if %15 {
      %16 = arith.index_cast %arg1 : i32 to index
      %c0 = arith.constant 0 : index
      %c0_8 = arith.constant 0 : index
      %17 = vector.load %arg13[%16, %c0, %c0_8] : memref<2x128x128xf32, #tpu.memory_space<vmem>>, vector<1x128x128xf32>
      %18 = vector.shape_cast %17 : vector<1x128x128xf32> to vector<128x128xf32>
      %c0_9 = arith.constant 0 : index
      %c0_10 = arith.constant 0 : index
      %19 = vector.load %arg11[%c0_9, %c0_10] : memref<1x128xf32, #tpu.memory_space<vmem>>, vector<1x128xf32>
      %20 = vector.broadcast %19 : vector<1x128xf32> to vector<128x128xf32>
      %21 = arith.mulf %18, %20 : vector<128x128xf32>
      %c0_11 = arith.constant 0 : index
      %c0_12 = arith.constant 0 : index
      %22 = vector.load %arg12[%c0_11, %c0_12] : memref<1x128xf32, #tpu.memory_space<vmem>>, vector<1x128xf32>
      %23 = vector.broadcast %22 : vector<1x128xf32> to vector<128x128xf32>
      %24 = arith.addf %21, %23 : vector<128x128xf32>
      %cst = arith.constant 5.000000e-01 : f32
      %25 = vector.broadcast %cst : f32 to vector<128x128xf32>
      %26 = arith.mulf %25, %24 : vector<128x128xf32>
      %cst_13 = arith.constant 0.707106769 : f32
      %27 = vector.broadcast %cst_13 : f32 to vector<128x128xf32>
      %28 = arith.mulf %24, %27 : vector<128x128xf32>
      %29 = math.erf %28 : vector<128x128xf32>
      %cst_14 = arith.constant 1.000000e+00 : f32
      %30 = vector.broadcast %cst_14 : f32 to vector<128x128xf32>
      %31 = arith.addf %30, %29 : vector<128x128xf32>
      %32 = arith.mulf %26, %31 : vector<128x128xf32>
      %c0_15 = arith.constant 0 : index
      %c0_16 = arith.constant 0 : index
      %33 = vector.load %arg6[%c0_15, %c0_16] : memref<128x32xf32, #tpu.memory_space<vmem>>, vector<128x32xf32>
      %cst_17 = arith.constant dense<0.000000e+00> : vector<128x32xf32>
      %34 = tpu.matmul %32, %33, %cst_17 {dimension_numbers = #tpu.dot_dimension_numbers<[1], [0], [0], [1], [0, 0, 1, 1], [], []>} : vector<128x128xf32>, vector<128x32xf32>, vector<128x32xf32> -> vector<128x32xf32>
      %c0_18 = arith.constant 0 : index
      %c0_19 = arith.constant 0 : index
      %35 = vector.load %arg7[%c0_18, %c0_19] : memref<1x32xf32, #tpu.memory_space<vmem>>, vector<1x32xf32>
      %36 = vector.broadcast %35 : vector<1x32xf32> to vector<128x32xf32>
      %37 = arith.addf %34, %36 : vector<128x32xf32>
      %c0_20 = arith.constant 0 : index
      %c0_21 = arith.constant 0 : index
      %38 = vector.load %arg8[%c0_20, %c0_21] : memref<128x32xf32, #tpu.memory_space<vmem>>, vector<128x32xf32>
      tpu.vector_store %arg8[%c0_20, %c0_21], %37 {strides = array<i32>} : memref<128x32xf32, #tpu.memory_space<vmem>>, vector<128x32xf32>,
    } else {
    }
    return
  }
  func.func @transform_0(%arg0: i32, %arg1: i32) -> (i32, i32) {
    %c1_i32 = arith.constant 1 : i32
    %0 = arith.subi %c1_i32, %arg0 : i32
    %1 = arith.muli %0, %arg1 : i32
    %c1_i32_0 = arith.constant 1 : i32
    %2 = arith.muli %arg0, %c1_i32_0 : i32
    %3 = arith.addi %1, %2 : i32
    %c0_i32 = arith.constant 0 : i32
    %c0_i32_1 = arith.constant 0 : i32
    return %3, %c0_i32 : i32, i32
  }
  func.func @transform_1(%arg0: i32, %arg1: i32) -> (i32, i32) {
    %c0_i32 = arith.constant 0 : i32
    %c0_i32_0 = arith.constant 0 : i32
    %c0_i32_1 = arith.constant 0 : i32
    return %c0_i32, %c0_i32_0 : i32, i32
  }
  func.func @transform_2(%arg0: i32, %arg1: i32) -> (i32, i32) {
    %c0_i32 = arith.constant 0 : i32
    %c0_i32_0 = arith.constant 0 : i32
    %c0_i32_1 = arith.constant 0 : i32
    return %c0_i32, %c0_i32_0 : i32, i32
  }
  func.func @transform_3(%arg0: i32, %arg1: i32) -> (i32, i32) {
    %c0_i32 = arith.constant 0 : i32
    %c0_i32_0 = arith.constant 0 : i32
    %c0_i32_1 = arith.constant 0 : i32
    return %c0_i32, %c0_i32_0 : i32, i32
  }
  func.func @transform_4(%arg0: i32, %arg1: i32) -> (i32, i32) {
    %c0_i32 = arith.constant 0 : i32
    %c0_i32_0 = arith.constant 0 : i32
    %c0_i32_1 = arith.constant 0 : i32
    return %c0_i32, %c0_i32_0 : i32, i32
  }
  func.func @transform_5(%arg0: i32, %arg1: i32) -> (i32, i32) {
    %c0_i32 = arith.constant 0 : i32
    %c0_i32_0 = arith.constant 0 : i32
    %c0_i32_1 = arith.constant 0 : i32
    return %c0_i32, %c0_i32_0 : i32, i32
  }
  func.func @transform_6(%arg0: i32, %arg1: i32) -> (i32, i32) {
    %0 = arith.muli %arg1, %arg0 : i32
    %c0_i32 = arith.constant 0 : i32
    %c0_i32_0 = arith.constant 0 : i32
    return %0, %c0_i32 : i32, i32
  }
}

</mosaic_0001>

<llo_original>
// kernel: tpu_custom_call.1
$region0: #{tpu_custom_call.1}
  #allocation0 [shape = 'u32[]', space=smem, size = 0x4, offset = 0x4, fixed_abs, tag = 'smem constant byte address 0x4 - core index']
  #allocation1 [shape = 'u32[144,128]{1,0:T(1,128)}', space=vmem, size = 0x12000, scoped, tag = 'internal scratch']
  #allocation2 [shape = 'f32[1,128]{1,0:T(1,128)}', space=vmem, size = 0x200, scoped, tag = 'scratch operand']
  #allocation3 [shape = 'f32[1,128]{1,0:T(1,128)}', space=vmem, size = 0x200, scoped, tag = 'scratch operand']
  #allocation4 [shape = 'f32[1,128]{1,0:T(1,128)}', space=vmem, size = 0x200, scoped, tag = 'scratch operand']
  #allocation5 [shape = 'f32[1,128]{1,0:T(1,128)}', space=vmem, size = 0x200, scoped, tag = 'scratch operand']
  #allocation6 [shape = 'f32[2,128,128]{2,1,0:T(8,128)}', space=vmem, size = 0x20000, scoped, tag = 'scratch operand']
  %s0 = inlined_call_operand.hbm [shape: f32[256,128], index: 0, kind: input, shape index: {}]
  %s1 = inlined_call_operand.vmem [shape: f32[128,128], index: 1, kind: input, shape index: {}]
  %s2 = inlined_call_operand.vmem [shape: f32[1,128], index: 2, kind: input, shape index: {}]
  %s3 = inlined_call_operand.vmem [shape: f32[1,128], index: 3, kind: input, shape index: {}]
  %s4 = inlined_call_operand.vmem [shape: f32[128,32], index: 4, kind: input, shape index: {}]
  %s5 = inlined_call_operand.vmem [shape: f32[1,32], index: 5, kind: input, shape index: {}]
  %s6 = inlined_call_operand.vmem [shape: f32[256,32], index: 6, kind: output, shape index: {}]
  %s7 = sld [smem:[#allocation0]]
  $region77: #{tpu_custom_call.1} parent=0
    _
  %s9 = ssub.s32 1, %s7
  %s10 = scalar_select 0, %s9, %s7
  $region1: #{tpu_custom_call.1} parent=0
    #allocation7 [shape = 'u8[131072]{0}', space=vmem, size = 0x20000, scoped, tag = 'input window, operand 0']
    #allocation8 [shape = 's32[2]{0}', space=sflag, size = 0x8, scoped, tag = 'scoped memory for tpu_custom_call.1']
    %11 = vsyncpa [#allocation8], 0
    %s12 = scalar_lea.sflag [#allocation8], 1
    %13 = vsyncpa %s12, 0
    loop: start=0, step=1, limit=6
    $region2: #{tpu_custom_call.1} parent=1 // loop_pre_header
      _
    $region3: #{tpu_custom_call.1} parent=1 // loop_header
      %s15 = sphi 0, %s19
      %p16 = scmp.ge.s32.totalorder %s15, 6
      %s22 = sphi 0, %s34
      %s23 = sphi 0, %s30
      %s24 = sphi 0, %s22
      %s25 = sphi 0, %s23
      %s26 = sphi 0, %s24
      %s27 = sphi 0, %s25
      %s43 = sphi 0, %s45
      %s46 = sphi 0, %s43
      %s47 = sphi 0, %s46
      %s63 = sphi 0, %s47
      %s67 = sphi 0, %s67
      %s69 = sphi 0, %s67
      %s70 = sphi 0, %s69
      %s84 = sphi 0, %s70
      %s88 = sphi 0, %s88
      %s90 = sphi 0, %s88
      %s91 = sphi 0, %s90
      %s105 = sphi 0, %s91
      %s109 = sphi 0, %s109
      %s111 = sphi 0, %s109
      %s112 = sphi 0, %s111
      %s126 = sphi 0, %s112
      %s130 = sphi 0, %s130
      %s132 = sphi 0, %s130
      %s133 = sphi 0, %s132
      %s147 = sphi 0, %s133
      %s151 = sphi 0, %s151
      %s153 = sphi 0, %s151
      %s154 = sphi 0, %s153
      %s168 = sphi 0, %s154
      %s176 = sphi 0, %s178
      %s179 = sphi 0, %s176
      %s180 = sphi 0, %s179
      %s196 = sphi 0, %s180
    $region4: #{tpu_custom_call.1} parent=1 // loop_header_branch
      %18 = sbr.rel (%p16) target = $region8
    $region5: #{tpu_custom_call.1} parent=1 // loop_body
      %s20 = ssub.s32 %s15, 1
      %s21 = ssub.s32 %s15, 2
      %s28 = sadd.s32 1, %s23
      %p29 = scmp.ge.s32.totalorder %s28, 2
      %s30 = scalar_select %p29, 0, %s28
      %s31 = sadd.s32 1, %s22
      %s32 = scalar_select %p29, %s31, %s22
      %p33 = scmp.ge.s32.totalorder %s32, 2
      %s34 = scalar_select %p33, 0, %s32
      %s35 = ssub.s32 1, %s22
      %s36 = smul.u32 %s35, %s23
      %s37 = sadd.s32 %s36, %s22
      %s38 = ssub.s32 1, %s34
      %s39 = smul.u32 %s38, %s30
      %s40 = sadd.s32 %s39, %s34
      %s41 = ssub.s32 %s37, %s40
      %p42 = scmp.eq.s32.totalorder %s41, 0
      %s44 = sadd.s32 %s43, 1
      %s45 = scalar_select %p42, %s43, %s44
      %p48 = pneg %p42
      %p49 = scmp.eq.s32.totalorder %s15, 3
      %p50 = por %p48, %p49
      %p51 = scmp.ne.s32.totalorder %s43, %s46
      %p52 = scmp.eq.s32.totalorder %s15, 0
      %p53 = por %p51, %p52
      %p54 = scmp.ne.s32.totalorder %s43, %s46
      %p55 = scmp.eq.s32.totalorder %s20, 3
      %p56 = por %p54, %p55
      %p57 = scmp.ne.s32.totalorder %s46, %s47
      %p58 = scmp.eq.s32.totalorder %s20, 0
      %p59 = por %p57, %p58
      %p60 = scmp.ne.s32.totalorder %s46, %s47
      %p61 = scmp.eq.s32.totalorder %s21, 3
      %p62 = por %p60, %p61
      %p64 = scmp.ne.s32.totalorder %s47, %s63
      %p65 = scmp.eq.s32.totalorder %s21, 0
      %p66 = por %p64, %p65
      %s68 = sadd.s32 %s67, 1
      %p71 = scmp.eq.s32.totalorder %s15, 3
      %p72 = scmp.ne.s32.totalorder %s67, %s69
      %p73 = scmp.eq.s32.totalorder %s15, 0
      %p74 = por %p72, %p73
      %p75 = scmp.ne.s32.totalorder %s67, %s69
      %p76 = scmp.eq.s32.totalorder %s20, 3
      %p77 = por %p75, %p76
      %p78 = scmp.ne.s32.totalorder %s69, %s70
      %p79 = scmp.eq.s32.totalorder %s20, 0
      %p80 = por %p78, %p79
      %p81 = scmp.ne.s32.totalorder %s69, %s70
      %p82 = scmp.eq.s32.totalorder %s21, 3
      %p83 = por %p81, %p82
      %p85 = scmp.ne.s32.totalorder %s70, %s84
      %p86 = scmp.eq.s32.totalorder %s21, 0
      %p87 = por %p85, %p86
      %s89 = sadd.s32 %s88, 1
      %p92 = scmp.eq.s32.totalorder %s15, 3
      %p93 = scmp.ne.s32.totalorder %s88, %s90
      %p94 = scmp.eq.s32.totalorder %s15, 0
      %p95 = por %p93, %p94
      %p96 = scmp.ne.s32.totalorder %s88, %s90
      %p97 = scmp.eq.s32.totalorder %s20, 3
      %p98 = por %p96, %p97
      %p99 = scmp.ne.s32.totalorder %s90, %s91
      %p100 = scmp.eq.s32.totalorder %s20, 0
      %p101 = por %p99, %p100
      %p102 = scmp.ne.s32.totalorder %s90, %s91
      %p103 = scmp.eq.s32.totalorder %s21, 3
      %p104 = por %p102, %p103
      %p106 = scmp.ne.s32.totalorder %s91, %s105
      %p107 = scmp.eq.s32.totalorder %s21, 0
      %p108 = por %p106, %p107
      %s110 = sadd.s32 %s109, 1
      %p113 = scmp.eq.s32.totalorder %s15, 3
      %p114 = scmp.ne.s32.totalorder %s109, %s111
      %p115 = scmp.eq.s32.totalorder %s15, 0
      %p116 = por %p114, %p115
      %p117 = scmp.ne.s32.totalorder %s109, %s111
      %p118 = scmp.eq.s32.totalorder %s20, 3
      %p119 = por %p117, %p118
      %p120 = scmp.ne.s32.totalorder %s111, %s112
      %p121 = scmp.eq.s32.totalorder %s20, 0
      %p122 = por %p120, %p121
      %p123 = scmp.ne.s32.totalorder %s111, %s112
      %p124 = scmp.eq.s32.totalorder %s21, 3
      %p125 = por %p123, %p124
      %p127 = scmp.ne.s32.totalorder %s112, %s126
      %p128 = scmp.eq.s32.totalorder %s21, 0
      %p129 = por %p127, %p128
      %s131 = sadd.s32 %s130, 1
      %p134 = scmp.eq.s32.totalorder %s15, 3
      %p135 = scmp.ne.s32.totalorder %s130, %s132
      %p136 = scmp.eq.s32.totalorder %s15, 0
      %p137 = por %p135, %p136
      %p138 = scmp.ne.s32.totalorder %s130, %s132
      %p139 = scmp.eq.s32.totalorder %s20, 3
      %p140 = por %p138, %p139
      %p141 = scmp.ne.s32.totalorder %s132, %s133
      %p142 = scmp.eq.s32.totalorder %s20, 0
      %p143 = por %p141, %p142
      %p144 = scmp.ne.s32.totalorder %s132, %s133
      %p145 = scmp.eq.s32.totalorder %s21, 3
      %p146 = por %p144, %p145
      %p148 = scmp.ne.s32.totalorder %s133, %s147
      %p149 = scmp.eq.s32.totalorder %s21, 0
      %p150 = por %p148, %p149
      %s152 = sadd.s32 %s151, 1
      %p155 = scmp.eq.s32.totalorder %s15, 3
      %p156 = scmp.ne.s32.totalorder %s151, %s153
      %p157 = scmp.eq.s32.totalorder %s15, 0
      %p158 = por %p156, %p157
      %p159 = scmp.ne.s32.totalorder %s151, %s153
      %p160 = scmp.eq.s32.totalorder %s20, 3
      %p161 = por %p159, %p160
      %p162 = scmp.ne.s32.totalorder %s153, %s154
      %p163 = scmp.eq.s32.totalorder %s20, 0
      %p164 = por %p162, %p163
      %p165 = scmp.ne.s32.totalorder %s153, %s154
      %p166 = scmp.eq.s32.totalorder %s21, 3
      %p167 = por %p165, %p166
      %p169 = scmp.ne.s32.totalorder %s154, %s168
      %p170 = scmp.eq.s32.totalorder %s21, 0
      %p171 = por %p169, %p170
      %s172 = smul.u32 %s23, %s22
      %s173 = smul.u32 %s30, %s34
      %s174 = ssub.s32 %s172, %s173
      %p175 = scmp.eq.s32.totalorder %s174, 0
      %s177 = sadd.s32 %s176, 1
      %s178 = scalar_select %p175, %s176, %s177
      %p181 = pneg %p175
      %p182 = scmp.eq.s32.totalorder %s15, 3
      %p183 = por %p181, %p182
      %p184 = scmp.ne.s32.totalorder %s176, %s179
      %p185 = scmp.eq.s32.totalorder %s15, 0
      %p186 = por %p184, %p185
      %p187 = scmp.ne.s32.totalorder %s176, %s179
      %p188 = scmp.eq.s32.totalorder %s20, 3
      %p189 = por %p187, %p188
      %p190 = scmp.ne.s32.totalorder %s179, %s180
      %p191 = scmp.eq.s32.totalorder %s20, 0
      %p192 = por %p190, %p191
      %p193 = scmp.ne.s32.totalorder %s179, %s180
      %p194 = scmp.eq.s32.totalorder %s21, 3
      %p195 = por %p193, %p194
      %p197 = scmp.ne.s32.totalorder %s180, %s196
      %p198 = scmp.eq.s32.totalorder %s21, 0
      %p199 = por %p197, %p198
      %p200 = scmp.le.s32.totalorder 1, %s15
      %p201 = scmp.lt.s32.totalorder %s15, 5
      %p202 = pnand %p200, %p201
      %p203 = pneg %p202
      // Predicated region
      $region9: #{tpu_custom_call.1} parent=5 // pred_check
        _
      $region10: #{tpu_custom_call.1} parent=5 // pred_check_branch
        %205 = sbr.rel (%p202) target = $region12
      $region11: #{tpu_custom_call.1} parent=5 // pred_region
        %s206 = ssub.s32 %s15, 1
        // Predicated region
        $region13: #{tpu_custom_call.1} parent=11 // pred_check
          %p207 = pneg %p80
        $region14: #{tpu_custom_call.1} parent=11 // pred_check_branch
          %209 = sbr.rel (%p207) target = $region16
        $region15: #{tpu_custom_call.1} parent=11 // pred_region
          _
        $region16: #{tpu_custom_call.1} parent=11 // pred_fallthru
          _
        // Predicated region
        $region17: #{tpu_custom_call.1} parent=11 // pred_check
          %p210 = pneg %p101
        $region18: #{tpu_custom_call.1} parent=11 // pred_check_branch
          %212 = sbr.rel (%p210) target = $region20
        $region19: #{tpu_custom_call.1} parent=11 // pred_region
          _
        $region20: #{tpu_custom_call.1} parent=11 // pred_fallthru
          _
        // Predicated region
        $region21: #{tpu_custom_call.1} parent=11 // pred_check
          %p213 = pneg %p122
        $region22: #{tpu_custom_call.1} parent=11 // pred_check_branch
          %215 = sbr.rel (%p213) target = $region24
        $region23: #{tpu_custom_call.1} parent=11 // pred_region
          _
        $region24: #{tpu_custom_call.1} parent=11 // pred_fallthru
          _
        // Predicated region
        $region25: #{tpu_custom_call.1} parent=11 // pred_check
          %p216 = pneg %p143
        $region26: #{tpu_custom_call.1} parent=11 // pred_check_branch
          %218 = sbr.rel (%p216) target = $region28
        $region27: #{tpu_custom_call.1} parent=11 // pred_region
          _
        $region28: #{tpu_custom_call.1} parent=11 // pred_fallthru
          _
        // Predicated region
        $region29: #{tpu_custom_call.1} parent=11 // pred_check
          %p219 = pneg %p164
        $region30: #{tpu_custom_call.1} parent=11 // pred_check_branch
          %221 = sbr.rel (%p219) target = $region32
        $region31: #{tpu_custom_call.1} parent=11 // pred_region
          _
        $region32: #{tpu_custom_call.1} parent=11 // pred_fallthru
          _
      $region12: #{tpu_custom_call.1} parent=5 // pred_fallthru
        _
      %p222 = scmp.lt.s32.totalorder %s15, 4
      // Predicated region
      $region33: #{tpu_custom_call.1} parent=5 // pred_check
        %p223 = pneg %p222
      $region34: #{tpu_custom_call.1} parent=5 // pred_check_branch
        %225 = sbr.rel (%p223) target = $region36
      $region35: #{tpu_custom_call.1} parent=5 // pred_region
        // Predicated region
        $region37: #{tpu_custom_call.1} parent=35 // pred_check
          %p226 = pneg %p53
        $region38: #{tpu_custom_call.1} parent=35 // pred_check_branch
          %228 = sbr.rel (%p226) target = $region40
        $region39: #{tpu_custom_call.1} parent=35 // pred_region
          %s229 = sand.u32 %s43, 1
          %s230 = scalar_lea.sflag [#allocation8], %s229
          %s231 = sand.u32 %s43, 1
          %s232 = smul.addr %s231, 128
          %s233 = scalar_lea.vmem [#allocation7], %s232
          %s234 = ssub.s32 1, %s22
          %s235 = smul.u32 %s234, %s23
          %s236 = sadd.s32 %s235, %s22
          %s237 = smul.u32 16, %s236
          %s239 = ssub.s32 2048, 2048
          %240 = vsyncadd %s230, %s239
          %s241 = smul.addr %s237, 128
          %s242 = scalar_lea.hbm %s0, %s241
          %s243 = sshll.u32 %s233, 4
          %s244 = int_to_ptr.vmem [resolvable:$true] %s243
          %249 = dma.hbm_to_vmem [thread:$0]  %s242, 2048, %s244, %s230, 128, 128, 8
        $region40: #{tpu_custom_call.1} parent=35 // pred_fallthru
          _
      $region36: #{tpu_custom_call.1} parent=5 // pred_fallthru
        _
      %p250 = scmp.le.s32.totalorder 1, %s15
      %p251 = scmp.lt.s32.totalorder %s15, 5
      %p252 = pnand %p250, %p251
      %p253 = pneg %p252
      // Predicated region
      $region41: #{tpu_custom_call.1} parent=5 // pred_check
        _
      $region42: #{tpu_custom_call.1} parent=5 // pred_check_branch
        %255 = sbr.rel (%p252) target = $region44
      $region43: #{tpu_custom_call.1} parent=5 // pred_region
        %s256 = ssub.s32 %s15, 1
        %s257 = sand.u32 %s46, 1
        %s258 = scalar_lea.sflag [#allocation8], %s257
        %s259 = sand.u32 %s46, 1
        %s260 = smul.addr %s259, 128
        %s261 = scalar_lea.vmem [#allocation7], %s260
        // Predicated region
        $region45: #{tpu_custom_call.1} parent=43 // pred_check
          %p262 = pneg %p59
        $region46: #{tpu_custom_call.1} parent=43 // pred_check_branch
          %264 = sbr.rel (%p262) target = $region48
        $region47: #{tpu_custom_call.1} parent=43 // pred_region
          %265 = dma.done %s258, 2048
        $region48: #{tpu_custom_call.1} parent=43 // pred_fallthru
          _
        %s266 = sand.u32 %s46, 1
        %s267 = scalar_lea.sflag [#allocation8], %s266
        %s268 = sand.u32 %s46, 1
        %s269 = smul.addr %s268, 128
        %s270 = scalar_lea.vmem [#allocation7], %s269
        %p271 = pneg %p59
        %p272 = pneg %p56
        %p273 = pneg %p80
        %p274 = pneg %p77
        %p275 = pneg %p101
        %p276 = pneg %p98
        %p277 = pneg %p122
        %p278 = pneg %p119
        %p279 = pneg %p143
        %p280 = pneg %p140
        %p281 = pneg %p164
        %p282 = pneg %p161
        %p283 = pneg %p192
        %p284 = pneg %p189
        %s285 = smul.u32 %s25, %s24
        %s286 = smul.u32 16, %s285
        %p287 = scmp.lt.s32.totalorder %s286, 31
        %s288 = scalar_select %p287, %s286, 31
        %s289 = smul.addr %s288, 8
        %s290 = scalar_lea.vmem %s6, %s289
        %s291 = ssub.s32 1, %s24
        %s292 = smul.u32 %s291, %s25
        %s293 = sadd.s32 %s292, %s24
        %s294 = smul.u32 16, %s293
        %s295 = smul.u32 %s25, %s24
        %s296 = smul.u32 16, %s295
        %p297 = scmp.lt.s32.totalorder %s296, 31
        %s298 = scalar_select %p297, %s296, 31
        %s299 = smul.addr %s298, 8
        %s300 = scalar_lea.vmem %s6, %s299
        %s301 = smul.u32 %s25, %s24
        %s302 = smul.u32 16, %s301
        %p303 = scmp.eq.s32.totalorder %s24, 0
        %p304 = scmp.eq.s32.totalorder %s25, 0
        %p305 = pnand %p303, %p304
        %p306 = pneg %p305
        // Predicated region
        $region49: #{tpu_custom_call.1} parent=43 // pred_check
          _
        $region50: #{tpu_custom_call.1} parent=43 // pred_check_branch
          %308 = sbr.rel (%p305) target = $region52
        $region51: #{tpu_custom_call.1} parent=43 // pred_region
          %309 = vst [vmem:[#allocation2] sm:$0x1] 0.0
          %310 = vst [vmem:[#allocation3] sm:$0x1] 0.0
        $region52: #{tpu_custom_call.1} parent=43 // pred_fallthru
          _
        // Predicated region
        $region53: #{tpu_custom_call.1} parent=43 // pred_check
          %p311 = pneg %p303
        $region54: #{tpu_custom_call.1} parent=43 // pred_check_branch
          %313 = sbr.rel (%p311) target = $region56
        $region55: #{tpu_custom_call.1} parent=43 // pred_region
          %v314 = vld [vmem:[%s261] sm:$0xff]
          %v315 = vld [vmem:[%s261 + $0x8] sm:$0xff]
          %v316 = vld [vmem:[%s261 + $0x10] sm:$0xff]
          %v317 = vld [vmem:[%s261 + $0x18] sm:$0xff]
          %v318 = vld [vmem:[%s261 + $0x20] sm:$0xff]
          %v319 = vld [vmem:[%s261 + $0x28] sm:$0xff]
          %v320 = vld [vmem:[%s261 + $0x30] sm:$0xff]
          %v321 = vld [vmem:[%s261 + $0x38] sm:$0xff]
          %v322 = vld [vmem:[%s261 + $0x40] sm:$0xff]
          %v323 = vld [vmem:[%s261 + $0x48] sm:$0xff]
          %v324 = vld [vmem:[%s261 + $0x50] sm:$0xff]
          %v325 = vld [vmem:[%s261 + $0x58] sm:$0xff]
          %v326 = vld [vmem:[%s261 + $0x60] sm:$0xff]
          %v327 = vld [vmem:[%s261 + $0x68] sm:$0xff]
          %v328 = vld [vmem:[%s261 + $0x70] sm:$0xff]
          %v329 = vld [vmem:[%s261 + $0x78] sm:$0xff]
          %v330 = vld [vmem:[%s1] sm:$0xff]
          %v331 = vld [vmem:[%s1 + $0x8] sm:$0xff]
          %v332 = vld [vmem:[%s1 + $0x10] sm:$0xff]
          %v333 = vld [vmem:[%s1 + $0x18] sm:$0xff]
          %v334 = vld [vmem:[%s1 + $0x20] sm:$0xff]
          %v335 = vld [vmem:[%s1 + $0x28] sm:$0xff]
          %v336 = vld [vmem:[%s1 + $0x30] sm:$0xff]
          %v337 = vld [vmem:[%s1 + $0x38] sm:$0xff]
          %v338 = vld [vmem:[%s1 + $0x40] sm:$0xff]
          %v339 = vld [vmem:[%s1 + $0x48] sm:$0xff]
          %v340 = vld [vmem:[%s1 + $0x50] sm:$0xff]
          %v341 = vld [vmem:[%s1 + $0x58] sm:$0xff]
          %v342 = vld [vmem:[%s1 + $0x60] sm:$0xff]
          %v343 = vld [vmem:[%s1 + $0x68] sm:$0xff]
          %v344 = vld [vmem:[%s1 + $0x70] sm:$0xff]
          %v345 = vld [vmem:[%s1 + $0x78] sm:$0xff]
          %346 = vmatprep.subr.mxu0 0.0
          %347 = vmatpush1.msra.mxu0 %v345
          %348 = vmatprep.subr.mxu0 0.0
          %349 = vmatpush1.msra.mxu0 %v344
          %350 = vmatprep.subr.mxu0 0.0
          %351 = vmatpush1.msra.mxu0 %v343
          %352 = vmatprep.subr.mxu0 0.0
          %353 = vmatpush1.msra.mxu0 %v342
          %354 = vmatprep.subr.mxu0 0.0
          %355 = vmatpush1.msra.mxu0 %v341
          %356 = vmatprep.subr.mxu0 0.0
          %357 = vmatpush1.msra.mxu0 %v340
          %358 = vmatprep.subr.mxu0 0.0
          %359 = vmatpush1.msra.mxu0 %v339
          %360 = vmatprep.subr.mxu0 0.0
          %361 = vmatpush1.msra.mxu0 %v338
          %362 = vmatprep.subr.mxu0 0.0
          %363 = vmatpush1.msra.mxu0 %v337
          %364 = vmatprep.subr.mxu0 0.0
          %365 = vmatpush1.msra.mxu0 %v336
          %366 = vmatprep.subr.mxu0 0.0
          %367 = vmatpush1.msra.mxu0 %v335
          %368 = vmatprep.subr.mxu0 0.0
          %369 = vmatpush1.msra.mxu0 %v334
          %370 = vmatprep.subr.mxu0 0.0
          %371 = vmatpush1.msra.mxu0 %v333
          %372 = vmatprep.subr.mxu0 0.0
          %373 = vmatpush1.msra.mxu0 %v332
          %374 = vmatprep.subr.mxu0 0.0
          %375 = vmatpush1.msra.mxu0 %v331
          %376 = vmatprep.subr.mxu0 0.0
          %377 = vmatpush1.msra.mxu0 %v330
          %378 = vmatprep.subr.mxu0 0.0
          %379 = vmatpush2.msra.mxu0 0.0
          %380 = vmatprep.subr.mxu0 0.0
          %381 = vmatpush2.msra.mxu0 0.0
          %382 = vmatprep.subr.mxu0 0.0
          %383 = vmatpush2.msra.mxu0 0.0
          %384 = vmatprep.subr.mxu0 0.0
          %385 = vmatpush2.msra.mxu0 0.0
          %386 = vmatprep.subr.mxu0 0.0
          %387 = vmatpush2.msra.mxu0 0.0
          %388 = vmatprep.subr.mxu0 0.0
          %389 = vmatpush2.msra.mxu0 0.0
          %390 = vmatprep.subr.mxu0 0.0
          %391 = vmatpush2.msra.mxu0 0.0
          %392 = vmatprep.subr.mxu0 0.0
          %393 = vmatpush2.msra.mxu0 0.0
          %394 = vmatprep.subr.mxu0 0.0
          %395 = vmatpush2.msra.mxu0 0.0
          %396 = vmatprep.subr.mxu0 0.0
          %397 = vmatpush2.msra.mxu0 0.0
          %398 = vmatprep.subr.mxu0 0.0
          %399 = vmatpush2.msra.mxu0 0.0
          %400 = vmatprep.subr.mxu0 0.0
          %401 = vmatpush2.msra.mxu0 0.0
          %402 = vmatprep.subr.mxu0 0.0
          %403 = vmatpush2.msra.mxu0 0.0
          %404 = vmatprep.subr.mxu0 0.0
          %405 = vmatpush2.msra.mxu0 0.0
          %406 = vmatprep.subr.mxu0 0.0
          %407 = vmatpush2.msra.mxu0 0.0
          %408 = vmatprep.subr.mxu0 0.0
          %409 = vmatpush2.msra.mxu0 0.0
          %410 = vmatprep.mubr.f32.mxu0 0.0
          %411 = vmatmul.mubr.f32.gmra.mxu0 %v314
          %v412 = vpop.f32.mrf.mxu0
          %v413 = vadd.f32 0.0, %v412
          %v414 = vpop.f32.mrf.mxu0
          %415 = vmatprep.mubr.f32.mxu0 0.0
          %416 = vmatmul.mubr.f32.gmra.mxu0 %v315
          %v417 = vpop.f32.mrf.mxu0
          %v418 = vadd.f32 0.0, %v417
          %v419 = vpop.f32.mrf.mxu0
          %420 = vmatprep.mubr.f32.mxu0 0.0
          %421 = vmatmul.mubr.f32.gmra.mxu0 %v316
          %v422 = vpop.f32.mrf.mxu0
          %v423 = vadd.f32 0.0, %v422
          %v424 = vpop.f32.mrf.mxu0
          %425 = vmatprep.mubr.f32.mxu0 0.0
          %426 = vmatmul.mubr.f32.gmra.mxu0 %v317
          %v427 = vpop.f32.mrf.mxu0
          %v428 = vadd.f32 0.0, %v427
          %v429 = vpop.f32.mrf.mxu0
          %430 = vmatprep.mubr.f32.mxu0 0.0
          %431 = vmatmul.mubr.f32.gmra.mxu0 %v318
          %v432 = vpop.f32.mrf.mxu0
          %v433 = vadd.f32 0.0, %v432
          %v434 = vpop.f32.mrf.mxu0
          %435 = vmatprep.mubr.f32.mxu0 0.0
          %436 = vmatmul.mubr.f32.gmra.mxu0 %v319
          %v437 = vpop.f32.mrf.mxu0
          %v438 = vadd.f32 0.0, %v437
          %v439 = vpop.f32.mrf.mxu0
          %440 = vmatprep.mubr.f32.mxu0 0.0
          %441 = vmatmul.mubr.f32.gmra.mxu0 %v320
          %v442 = vpop.f32.mrf.mxu0
          %v443 = vadd.f32 0.0, %v442
          %v444 = vpop.f32.mrf.mxu0
          %445 = vmatprep.mubr.f32.mxu0 0.0
          %446 = vmatmul.mubr.f32.gmra.mxu0 %v321
          %v447 = vpop.f32.mrf.mxu0
          %v448 = vadd.f32 0.0, %v447
          %v449 = vpop.f32.mrf.mxu0
          %450 = vmatprep.mubr.f32.mxu0 0.0
          %451 = vmatmul.mubr.f32.gmra.mxu0 %v322
          %v452 = vpop.f32.mrf.mxu0
          %v453 = vadd.f32 0.0, %v452
          %v454 = vpop.f32.mrf.mxu0
          %455 = vmatprep.mubr.f32.mxu0 0.0
          %456 = vmatmul.mubr.f32.gmra.mxu0 %v323
          %v457 = vpop.f32.mrf.mxu0
          %v458 = vadd.f32 0.0, %v457
          %v459 = vpop.f32.mrf.mxu0
          %460 = vmatprep.mubr.f32.mxu0 0.0
          %461 = vmatmul.mubr.f32.gmra.mxu0 %v324
          %v462 = vpop.f32.mrf.mxu0
          %v463 = vadd.f32 0.0, %v462
          %v464 = vpop.f32.mrf.mxu0
          %465 = vmatprep.mubr.f32.mxu0 0.0
          %466 = vmatmul.mubr.f32.gmra.mxu0 %v325
          %v467 = vpop.f32.mrf.mxu0
          %v468 = vadd.f32 0.0, %v467
          %v469 = vpop.f32.mrf.mxu0
          %470 = vmatprep.mubr.f32.mxu0 0.0
          %471 = vmatmul.mubr.f32.gmra.mxu0 %v326
          %v472 = vpop.f32.mrf.mxu0
          %v473 = vadd.f32 0.0, %v472
          %v474 = vpop.f32.mrf.mxu0
          %475 = vmatprep.mubr.f32.mxu0 0.0
          %476 = vmatmul.mubr.f32.gmra.mxu0 %v327
          %v477 = vpop.f32.mrf.mxu0
          %v478 = vadd.f32 0.0, %v477
          %v479 = vpop.f32.mrf.mxu0
          %480 = vmatprep.mubr.f32.mxu0 0.0
          %481 = vmatmul.mubr.f32.gmra.mxu0 %v328
          %v482 = vpop.f32.mrf.mxu0
          %v483 = vadd.f32 0.0, %v482
          %v484 = vpop.f32.mrf.mxu0
          %485 = vmatprep.mubr.f32.mxu0 0.0
          %486 = vmatmul.mubr.f32.gmra.mxu0 %v329
          %v487 = vpop.f32.mrf.mxu0
          %v488 = vadd.f32 0.0, %v487
          %v489 = vpop.f32.mrf.mxu0
          %490 = vdwg.mxu0
          %s491 = smul.u32 %s25, 128
          %s492 = scalar_lea.vmem [#allocation6], %s491
          %493 = vst [vmem:[%s492] sm:$0xff] %v413
          %494 = vst [vmem:[%s492 + $0x8] sm:$0xff] %v418
          %495 = vst [vmem:[%s492 + $0x10] sm:$0xff] %v423
          %496 = vst [vmem:[%s492 + $0x18] sm:$0xff] %v428
          %497 = vst [vmem:[%s492 + $0x20] sm:$0xff] %v433
          %498 = vst [vmem:[%s492 + $0x28] sm:$0xff] %v438
          %499 = vst [vmem:[%s492 + $0x30] sm:$0xff] %v443
          %500 = vst [vmem:[%s492 + $0x38] sm:$0xff] %v448
          %501 = vst [vmem:[%s492 + $0x40] sm:$0xff] %v453
          %502 = vst [vmem:[%s492 + $0x48] sm:$0xff] %v458
          %503 = vst [vmem:[%s492 + $0x50] sm:$0xff] %v463
          %504 = vst [vmem:[%s492 + $0x58] sm:$0xff] %v468
          %505 = vst [vmem:[%s492 + $0x60] sm:$0xff] %v473
          %506 = vst [vmem:[%s492 + $0x68] sm:$0xff] %v478
          %507 = vst [vmem:[%s492 + $0x70] sm:$0xff] %v483
          %508 = vst [vmem:[%s492 + $0x78] sm:$0xff] %v488
          %v509 = vld [vmem:[#allocation2] sm:$0x1]
          %v510 = vadd.f32 %v413, %v418
          %v511 = vadd.f32 %v510, %v423
          %v512 = vadd.f32 %v511, %v428
          %v513 = vadd.f32 %v512, %v433
          %v514 = vadd.f32 %v513, %v438
          %v515 = vadd.f32 %v514, %v443
          %v516 = vadd.f32 %v515, %v448
          %v517 = vadd.f32 %v516, %v453
          %v518 = vadd.f32 %v517, %v458
          %v519 = vadd.f32 %v518, %v463
          %v520 = vadd.f32 %v519, %v468
          %v521 = vadd.f32 %v520, %v473
          %v522 = vadd.f32 %v521, %v478
          %v523 = vadd.f32 %v522, %v483
          %v524 = vadd.f32 %v523, %v488
          %v525 = vrot.slane %v524, 4
          %v526 = vadd.f32 %v524, %v525
          %v527 = vrot.slane %v526, 2
          %v528 = vadd.f32 %v526, %v527
          %v529 = vrot.slane %v528, 1
          %v530 = vadd.f32 %v528, %v529
          %v531 = vadd.f32 %v509, %v530
          %532 = vst [vmem:[#allocation2] sm:$0x1] %v531
          %v533 = vld [vmem:[#allocation3] sm:$0x1]
          %v534 = vmul.f32 %v413, %v413
          %v535 = vmul.f32 %v418, %v418
          %v536 = vmul.f32 %v423, %v423
          %v537 = vmul.f32 %v428, %v428
          %v538 = vmul.f32 %v433, %v433
          %v539 = vmul.f32 %v438, %v438
          %v540 = vmul.f32 %v443, %v443
          %v541 = vmul.f32 %v448, %v448
          %v542 = vmul.f32 %v453, %v453
          %v543 = vmul.f32 %v458, %v458
          %v544 = vmul.f32 %v463, %v463
          %v545 = vmul.f32 %v468, %v468
          %v546 = vmul.f32 %v473, %v473
          %v547 = vmul.f32 %v478, %v478
          %v548 = vmul.f32 %v483, %v483
          %v549 = vmul.f32 %v488, %v488
          %v550 = vadd.f32 %v534, %v535
          %v551 = vadd.f32 %v550, %v536
          %v552 = vadd.f32 %v551, %v537
          %v553 = vadd.f32 %v552, %v538
          %v554 = vadd.f32 %v553, %v539
          %v555 = vadd.f32 %v554, %v540
          %v556 = vadd.f32 %v555, %v541
          %v557 = vadd.f32 %v556, %v542
          %v558 = vadd.f32 %v557, %v543
          %v559 = vadd.f32 %v558, %v544
          %v560 = vadd.f32 %v559, %v545
          %v561 = vadd.f32 %v560, %v546
          %v562 = vadd.f32 %v561, %v547
          %v563 = vadd.f32 %v562, %v548
          %v564 = vadd.f32 %v563, %v549
          %v565 = vrot.slane %v564, 4
          %v566 = vadd.f32 %v564, %v565
          %v567 = vrot.slane %v566, 2
          %v568 = vadd.f32 %v566, %v567
          %v569 = vrot.slane %v568, 1
          %v570 = vadd.f32 %v568, %v569
          %v571 = vadd.f32 %v533, %v570
          %572 = vst [vmem:[#allocation3] sm:$0x1] %v571
        $region56: #{tpu_custom_call.1} parent=43 // pred_fallthru
          _
        %p573 = scmp.eq.s32.totalorder %s25, 1
        %p574 = pnand %p303, %p573
        %p575 = pneg %p574
        // Predicated region
        $region57: #{tpu_custom_call.1} parent=43 // pred_check
          _
        $region58: #{tpu_custom_call.1} parent=43 // pred_check_branch
          %577 = sbr.rel (%p574) target = $region60
        $region59: #{tpu_custom_call.1} parent=43 // pred_region
          %v578 = vld [vmem:[#allocation2] sm:$0x1]
          %v579 = vmul.f32 %v578, 0.00390625
          %v580 = vld [vmem:[#allocation3] sm:$0x1]
          %v581 = vmul.f32 %v580, 0.00390625
          %v582 = vmul.f32 %v579, %v579
          %v583 = vsub.f32 %v581, %v582
          %v584 = vld [vmem:[%s2] sm:$0x1]
          %v585 = vadd.f32 %v583, 1e-05
          %v586 = vrsqrt.pop %v585
          %v587 = vmul.f32 %v584, %v586
          %588 = vst [vmem:[#allocation4] sm:$0x1] %v587
          %v589 = vld [vmem:[%s3] sm:$0x1]
          %v590 = vmul.f32 %v579, %v587
          %v591 = vsub.f32 %v589, %v590
          %592 = vst [vmem:[#allocation5] sm:$0x1] %v591
        $region60: #{tpu_custom_call.1} parent=43 // pred_fallthru
          _
        %p593 = scmp.eq.s32.totalorder %s24, 1
        // Predicated region
        $region61: #{tpu_custom_call.1} parent=43 // pred_check
          %p594 = pneg %p593
        $region62: #{tpu_custom_call.1} parent=43 // pred_check_branch
          %596 = sbr.rel (%p594) target = $region64
        $region63: #{tpu_custom_call.1} parent=43 // pred_region
          %s597 = smul.u32 %s25, 128
          %s598 = scalar_lea.vmem [#allocation6], %s597
          %v599 = vld [vmem:[%s598] sm:$0xff]
          %v600 = vld [vmem:[%s598 + $0x8] sm:$0xff]
          %v601 = vld [vmem:[%s598 + $0x10] sm:$0xff]
          %v602 = vld [vmem:[%s598 + $0x18] sm:$0xff]
          %v603 = vld [vmem:[%s598 + $0x20] sm:$0xff]
          %v604 = vld [vmem:[%s598 + $0x28] sm:$0xff]
          %v605 = vld [vmem:[%s598 + $0x30] sm:$0xff]
          %v606 = vld [vmem:[%s598 + $0x38] sm:$0xff]
          %v607 = vld [vmem:[%s598 + $0x40] sm:$0xff]
          %v608 = vld [vmem:[%s598 + $0x48] sm:$0xff]
          %v609 = vld [vmem:[%s598 + $0x50] sm:$0xff]
          %v610 = vld [vmem:[%s598 + $0x58] sm:$0xff]
          %v611 = vld [vmem:[%s598 + $0x60] sm:$0xff]
          %v612 = vld [vmem:[%s598 + $0x68] sm:$0xff]
          %v613 = vld [vmem:[%s598 + $0x70] sm:$0xff]
          %v614 = vld [vmem:[%s598 + $0x78] sm:$0xff]
          %v615 = vld [vmem:[#allocation4] sm:$0x1]
          %v617 = vlaneseq
          %v618 = vshrl.u32 %v617, 7
          %v619 = vsub.s32 0, %v618
          %v620 = vrot.slane %v615, %v619
          %v622 = vmul.f32 %v599, %v620
          %v623 = vmul.f32 %v600, %v620
          %v624 = vmul.f32 %v601, %v620
          %v625 = vmul.f32 %v602, %v620
          %v626 = vmul.f32 %v603, %v620
          %v627 = vmul.f32 %v604, %v620
          %v628 = vmul.f32 %v605, %v620
          %v629 = vmul.f32 %v606, %v620
          %v630 = vmul.f32 %v607, %v620
          %v631 = vmul.f32 %v608, %v620
          %v632 = vmul.f32 %v609, %v620
          %v633 = vmul.f32 %v610, %v620
          %v634 = vmul.f32 %v611, %v620
          %v635 = vmul.f32 %v612, %v620
          %v636 = vmul.f32 %v613, %v620
          %v637 = vmul.f32 %v614, %v620
          %v638 = vld [vmem:[#allocation5] sm:$0x1]
          %v640 = vlaneseq
          %v641 = vshrl.u32 %v640, 7
          %v642 = vsub.s32 0, %v641
          %v643 = vrot.slane %v638, %v642
          %v645 = vadd.f32 %v622, %v643
          %v646 = vadd.f32 %v623, %v643
          %v647 = vadd.f32 %v624, %v643
          %v648 = vadd.f32 %v625, %v643
          %v649 = vadd.f32 %v626, %v643
          %v650 = vadd.f32 %v627, %v643
          %v651 = vadd.f32 %v628, %v643
          %v652 = vadd.f32 %v629, %v643
          %v653 = vadd.f32 %v630, %v643
          %v654 = vadd.f32 %v631, %v643
          %v655 = vadd.f32 %v632, %v643
          %v656 = vadd.f32 %v633, %v643
          %v657 = vadd.f32 %v634, %v643
          %v658 = vadd.f32 %v635, %v643
          %v659 = vadd.f32 %v636, %v643
          %v660 = vadd.f32 %v637, %v643
          %v661 = vmul.f32 %v645, 0.5
          %v662 = vmul.f32 %v646, 0.5
          %v663 = vmul.f32 %v647, 0.5
          %v664 = vmul.f32 %v648, 0.5
          %v665 = vmul.f32 %v649, 0.5
          %v666 = vmul.f32 %v650, 0.5
          %v667 = vmul.f32 %v651, 0.5
          %v668 = vmul.f32 %v652, 0.5
          %v669 = vmul.f32 %v653, 0.5
          %v670 = vmul.f32 %v654, 0.5
          %v671 = vmul.f32 %v655, 0.5
          %v672 = vmul.f32 %v656, 0.5
          %v673 = vmul.f32 %v657, 0.5
          %v674 = vmul.f32 %v658, 0.5
          %v675 = vmul.f32 %v659, 0.5
          %v676 = vmul.f32 %v660, 0.5
          %v677 = vmul.f32 %v645, 0.70710677
          %v678 = vmul.f32 %v646, 0.70710677
          %v679 = vmul.f32 %v647, 0.70710677
          %v680 = vmul.f32 %v648, 0.70710677
          %v681 = vmul.f32 %v649, 0.70710677
          %v682 = vmul.f32 %v650, 0.70710677
          %v683 = vmul.f32 %v651, 0.70710677
          %v684 = vmul.f32 %v652, 0.70710677
          %v685 = vmul.f32 %v653, 0.70710677
          %v686 = vmul.f32 %v654, 0.70710677
          %v687 = vmul.f32 %v655, 0.70710677
          %v688 = vmul.f32 %v656, 0.70710677
          %v689 = vmul.f32 %v657, 0.70710677
          %v690 = vmul.f32 %v658, 0.70710677
          %v691 = vmul.f32 %v659, 0.70710677
          %v692 = vmul.f32 %v660, 0.70710677
          %v693 = verf.f32.pop %v677
          %v694 = verf.f32.pop %v678
          %v695 = verf.f32.pop %v679
          %v696 = verf.f32.pop %v680
          %v697 = verf.f32.pop %v681
          %v698 = verf.f32.pop %v682
          %v699 = verf.f32.pop %v683
          %v700 = verf.f32.pop %v684
          %v701 = verf.f32.pop %v685
          %v702 = verf.f32.pop %v686
          %v703 = verf.f32.pop %v687
          %v704 = verf.f32.pop %v688
          %v705 = verf.f32.pop %v689
          %v706 = verf.f32.pop %v690
          %v707 = verf.f32.pop %v691
          %v708 = verf.f32.pop %v692
          %v709 = vadd.f32 %v693, 1.0
          %v710 = vadd.f32 %v694, 1.0
          %v711 = vadd.f32 %v695, 1.0
          %v712 = vadd.f32 %v696, 1.0
          %v713 = vadd.f32 %v697, 1.0
          %v714 = vadd.f32 %v698, 1.0
          %v715 = vadd.f32 %v699, 1.0
          %v716 = vadd.f32 %v700, 1.0
          %v717 = vadd.f32 %v701, 1.0
          %v718 = vadd.f32 %v702, 1.0
          %v719 = vadd.f32 %v703, 1.0
          %v720 = vadd.f32 %v704, 1.0
          %v721 = vadd.f32 %v705, 1.0
          %v722 = vadd.f32 %v706, 1.0
          %v723 = vadd.f32 %v707, 1.0
          %v724 = vadd.f32 %v708, 1.0
          %v725 = vmul.f32 %v661, %v709
          %v726 = vmul.f32 %v662, %v710
          %v727 = vmul.f32 %v663, %v711
          %v728 = vmul.f32 %v664, %v712
          %v729 = vmul.f32 %v665, %v713
          %v730 = vmul.f32 %v666, %v714
          %v731 = vmul.f32 %v667, %v715
          %v732 = vmul.f32 %v668, %v716
          %v733 = vmul.f32 %v669, %v717
          %v734 = vmul.f32 %v670, %v718
          %v735 = vmul.f32 %v671, %v719
          %v736 = vmul.f32 %v672, %v720
          %v737 = vmul.f32 %v673, %v721
          %v738 = vmul.f32 %v674, %v722
          %v739 = vmul.f32 %v675, %v723
          %v740 = vmul.f32 %v676, %v724
          %v741 = vld [vmem:[%s4] sm:$0xff]
          %v742 = vld [vmem:[%s4 + $0x8] sm:$0xff]
          %v743 = vld [vmem:[%s4 + $0x10] sm:$0xff]
          %v744 = vld [vmem:[%s4 + $0x18] sm:$0xff]
          %v745 = vld [vmem:[%s4 + $0x20] sm:$0xff]
          %v746 = vld [vmem:[%s4 + $0x28] sm:$0xff]
          %v747 = vld [vmem:[%s4 + $0x30] sm:$0xff]
          %v748 = vld [vmem:[%s4 + $0x38] sm:$0xff]
          %v749 = vld [vmem:[%s4 + $0x40] sm:$0xff]
          %v750 = vld [vmem:[%s4 + $0x48] sm:$0xff]
          %v751 = vld [vmem:[%s4 + $0x50] sm:$0xff]
          %v752 = vld [vmem:[%s4 + $0x58] sm:$0xff]
          %v753 = vld [vmem:[%s4 + $0x60] sm:$0xff]
          %v754 = vld [vmem:[%s4 + $0x68] sm:$0xff]
          %v755 = vld [vmem:[%s4 + $0x70] sm:$0xff]
          %v756 = vld [vmem:[%s4 + $0x78] sm:$0xff]
          %v757 = vld [vmem:[%s5] sm:$0x1]
          %v759 = vlaneseq
          %v760 = vshrl.u32 %v759, 7
          %v761 = vsub.s32 0, %v760
          %v762 = vrot.slane %v757, %v761
          %764 = vmatprep.subr.mxu0 0.0
          %765 = vmatpush1.msra.mxu0 %v756
          %766 = vmatprep.subr.mxu0 0.0
          %767 = vmatpush1.msra.mxu0 %v755
          %768 = vmatprep.subr.mxu0 0.0
          %769 = vmatpush1.msra.mxu0 %v754
          %770 = vmatprep.subr.mxu0 0.0
          %771 = vmatpush1.msra.mxu0 %v753
          %772 = vmatprep.subr.mxu0 0.0
          %773 = vmatpush1.msra.mxu0 %v752
          %774 = vmatprep.subr.mxu0 0.0
          %775 = vmatpush1.msra.mxu0 %v751
          %776 = vmatprep.subr.mxu0 0.0
          %777 = vmatpush1.msra.mxu0 %v750
          %778 = vmatprep.subr.mxu0 0.0
          %779 = vmatpush1.msra.mxu0 %v749
          %780 = vmatprep.subr.mxu0 0.0
          %781 = vmatpush1.msra.mxu0 %v748
          %782 = vmatprep.subr.mxu0 0.0
          %783 = vmatpush1.msra.mxu0 %v747
          %784 = vmatprep.subr.mxu0 0.0
          %785 = vmatpush1.msra.mxu0 %v746
          %786 = vmatprep.subr.mxu0 0.0
          %787 = vmatpush1.msra.mxu0 %v745
          %788 = vmatprep.subr.mxu0 0.0
          %789 = vmatpush1.msra.mxu0 %v744
          %790 = vmatprep.subr.mxu0 0.0
          %791 = vmatpush1.msra.mxu0 %v743
          %792 = vmatprep.subr.mxu0 0.0
          %793 = vmatpush1.msra.mxu0 %v742
          %794 = vmatprep.subr.mxu0 0.0
          %795 = vmatpush1.msra.mxu0 %v741
          %796 = vmatprep.subr.mxu0 0.0
          %797 = vmatpush2.msra.mxu0 0.0
          %798 = vmatprep.subr.mxu0 0.0
          %799 = vmatpush2.msra.mxu0 0.0
          %800 = vmatprep.subr.mxu0 0.0
          %801 = vmatpush2.msra.mxu0 0.0
          %802 = vmatprep.subr.mxu0 0.0
          %803 = vmatpush2.msra.mxu0 0.0
          %804 = vmatprep.subr.mxu0 0.0
          %805 = vmatpush2.msra.mxu0 0.0
          %806 = vmatprep.subr.mxu0 0.0
          %807 = vmatpush2.msra.mxu0 0.0
          %808 = vmatprep.subr.mxu0 0.0
          %809 = vmatpush2.msra.mxu0 0.0
          %810 = vmatprep.subr.mxu0 0.0
          %811 = vmatpush2.msra.mxu0 0.0
          %812 = vmatprep.subr.mxu0 0.0
          %813 = vmatpush2.msra.mxu0 0.0
          %814 = vmatprep.subr.mxu0 0.0
          %815 = vmatpush2.msra.mxu0 0.0
          %816 = vmatprep.subr.mxu0 0.0
          %817 = vmatpush2.msra.mxu0 0.0
          %818 = vmatprep.subr.mxu0 0.0
          %819 = vmatpush2.msra.mxu0 0.0
          %820 = vmatprep.subr.mxu0 0.0
          %821 = vmatpush2.msra.mxu0 0.0
          %822 = vmatprep.subr.mxu0 0.0
          %823 = vmatpush2.msra.mxu0 0.0
          %824 = vmatprep.subr.mxu0 0.0
          %825 = vmatpush2.msra.mxu0 0.0
          %826 = vmatprep.subr.mxu0 0.0
          %827 = vmatpush2.msra.mxu0 0.0
          %828 = vmatprep.mubr.f32.mxu0 0.0
          %829 = vmatmul.mubr.f32.gmra.mxu0 %v725
          %v830 = vpop.f32.mrf.mxu0
          %v831 = vadd.f32 %v762, %v830
          %v832 = vpop.f32.mrf.mxu0
          %833 = vmatprep.mubr.f32.mxu0 0.0
          %834 = vmatmul.mubr.f32.gmra.mxu0 %v726
          %v835 = vpop.f32.mrf.mxu0
          %v836 = vadd.f32 %v762, %v835
          %v837 = vpop.f32.mrf.mxu0
          %838 = vmatprep.mubr.f32.mxu0 0.0
          %839 = vmatmul.mubr.f32.gmra.mxu0 %v727
          %v840 = vpop.f32.mrf.mxu0
          %v841 = vadd.f32 %v762, %v840
          %v842 = vpop.f32.mrf.mxu0
          %843 = vmatprep.mubr.f32.mxu0 0.0
          %844 = vmatmul.mubr.f32.gmra.mxu0 %v728
          %v845 = vpop.f32.mrf.mxu0
          %v846 = vadd.f32 %v762, %v845
          %v847 = vpop.f32.mrf.mxu0
          %848 = vmatprep.mubr.f32.mxu0 0.0
          %849 = vmatmul.mubr.f32.gmra.mxu0 %v729
          %v850 = vpop.f32.mrf.mxu0
          %v851 = vadd.f32 %v762, %v850
          %v852 = vpop.f32.mrf.mxu0
          %853 = vmatprep.mubr.f32.mxu0 0.0
          %854 = vmatmul.mubr.f32.gmra.mxu0 %v730
          %v855 = vpop.f32.mrf.mxu0
          %v856 = vadd.f32 %v762, %v855
          %v857 = vpop.f32.mrf.mxu0
          %858 = vmatprep.mubr.f32.mxu0 0.0
          %859 = vmatmul.mubr.f32.gmra.mxu0 %v731
          %v860 = vpop.f32.mrf.mxu0
          %v861 = vadd.f32 %v762, %v860
          %v862 = vpop.f32.mrf.mxu0
          %863 = vmatprep.mubr.f32.mxu0 0.0
          %864 = vmatmul.mubr.f32.gmra.mxu0 %v732
          %v865 = vpop.f32.mrf.mxu0
          %v866 = vadd.f32 %v762, %v865
          %v867 = vpop.f32.mrf.mxu0
          %868 = vmatprep.mubr.f32.mxu0 0.0
          %869 = vmatmul.mubr.f32.gmra.mxu0 %v733
          %v870 = vpop.f32.mrf.mxu0
          %v871 = vadd.f32 %v762, %v870
          %v872 = vpop.f32.mrf.mxu0
          %873 = vmatprep.mubr.f32.mxu0 0.0
          %874 = vmatmul.mubr.f32.gmra.mxu0 %v734
          %v875 = vpop.f32.mrf.mxu0
          %v876 = vadd.f32 %v762, %v875
          %v877 = vpop.f32.mrf.mxu0
          %878 = vmatprep.mubr.f32.mxu0 0.0
          %879 = vmatmul.mubr.f32.gmra.mxu0 %v735
          %v880 = vpop.f32.mrf.mxu0
          %v881 = vadd.f32 %v762, %v880
          %v882 = vpop.f32.mrf.mxu0
          %883 = vmatprep.mubr.f32.mxu0 0.0
          %884 = vmatmul.mubr.f32.gmra.mxu0 %v736
          %v885 = vpop.f32.mrf.mxu0
          %v886 = vadd.f32 %v762, %v885
          %v887 = vpop.f32.mrf.mxu0
          %888 = vmatprep.mubr.f32.mxu0 0.0
          %889 = vmatmul.mubr.f32.gmra.mxu0 %v737
          %v890 = vpop.f32.mrf.mxu0
          %v891 = vadd.f32 %v762, %v890
          %v892 = vpop.f32.mrf.mxu0
          %893 = vmatprep.mubr.f32.mxu0 0.0
          %894 = vmatmul.mubr.f32.gmra.mxu0 %v738
          %v895 = vpop.f32.mrf.mxu0
          %v896 = vadd.f32 %v762, %v895
          %v897 = vpop.f32.mrf.mxu0
          %898 = vmatprep.mubr.f32.mxu0 0.0
          %899 = vmatmul.mubr.f32.gmra.mxu0 %v739
          %v900 = vpop.f32.mrf.mxu0
          %v901 = vadd.f32 %v762, %v900
          %v902 = vpop.f32.mrf.mxu0
          %903 = vmatprep.mubr.f32.mxu0 0.0
          %904 = vmatmul.mubr.f32.gmra.mxu0 %v740
          %v905 = vpop.f32.mrf.mxu0
          %v906 = vadd.f32 %v762, %v905
          %v907 = vpop.f32.mrf.mxu0
          %908 = vdwg.mxu0
          %vm909 = vcmask 261120
          %910 = vst.msk [vmem:[%s300] sm:$0xff] %vm909, %v831
          %911 = vst.msk [vmem:[%s300 + $0x8] sm:$0xff] %vm909, %v836
          %912 = vst.msk [vmem:[%s300 + $0x10] sm:$0xff] %vm909, %v841
          %913 = vst.msk [vmem:[%s300 + $0x18] sm:$0xff] %vm909, %v846
          %914 = vst.msk [vmem:[%s300 + $0x20] sm:$0xff] %vm909, %v851
          %915 = vst.msk [vmem:[%s300 + $0x28] sm:$0xff] %vm909, %v856
          %916 = vst.msk [vmem:[%s300 + $0x30] sm:$0xff] %vm909, %v861
          %917 = vst.msk [vmem:[%s300 + $0x38] sm:$0xff] %vm909, %v866
          %918 = vst.msk [vmem:[%s300 + $0x40] sm:$0xff] %vm909, %v871
          %919 = vst.msk [vmem:[%s300 + $0x48] sm:$0xff] %vm909, %v876
          %920 = vst.msk [vmem:[%s300 + $0x50] sm:$0xff] %vm909, %v881
          %921 = vst.msk [vmem:[%s300 + $0x58] sm:$0xff] %vm909, %v886
          %922 = vst.msk [vmem:[%s300 + $0x60] sm:$0xff] %vm909, %v891
          %923 = vst.msk [vmem:[%s300 + $0x68] sm:$0xff] %vm909, %v896
          %924 = vst.msk [vmem:[%s300 + $0x70] sm:$0xff] %vm909, %v901
          %925 = vst.msk [vmem:[%s300 + $0x78] sm:$0xff] %vm909, %v906
        $region64: #{tpu_custom_call.1} parent=43 // pred_fallthru
          _
        %s926 = smul.u32 %s25, %s24
        %s927 = smul.u32 16, %s926
        %p928 = scmp.lt.s32.totalorder %s927, 31
        %s929 = scalar_select %p928, %s927, 31
        %s930 = smul.addr %s929, 8
        %s931 = scalar_lea.vmem %s6, %s930
        // Predicated region
        $region65: #{tpu_custom_call.1} parent=43 // pred_check
          %p932 = pneg %p189
        $region66: #{tpu_custom_call.1} parent=43 // pred_check_branch
          %934 = sbr.rel (%p932) target = $region68
        $region67: #{tpu_custom_call.1} parent=43 // pred_region
          %s935 = smul.u32 %s25, %s24
          %s936 = smul.u32 16, %s935
        $region68: #{tpu_custom_call.1} parent=43 // pred_fallthru
          _
      $region44: #{tpu_custom_call.1} parent=5 // pred_fallthru
        _
      %p937 = scmp.le.s32.totalorder 2, %s15
      // Predicated region
      $region69: #{tpu_custom_call.1} parent=5 // pred_check
        %p938 = pneg %p937
      $region70: #{tpu_custom_call.1} parent=5 // pred_check_branch
        %940 = sbr.rel (%p938) target = $region72
      $region71: #{tpu_custom_call.1} parent=5 // pred_region
        %s941 = ssub.s32 %s15, 2
        // Predicated region
        $region73: #{tpu_custom_call.1} parent=71 // pred_check
          %p942 = pneg %p195
        $region74: #{tpu_custom_call.1} parent=71 // pred_check_branch
          %944 = sbr.rel (%p942) target = $region76
        $region75: #{tpu_custom_call.1} parent=71 // pred_region
          %s945 = smul.u32 %s27, %s26
          %s946 = smul.u32 16, %s945
          %p947 = scmp.lt.s32.totalorder %s946, 31
          %s948 = scalar_select %p947, %s946, 31
          %s949 = smul.addr %s948, 8
          %s950 = scalar_lea.vmem %s6, %s949
        $region76: #{tpu_custom_call.1} parent=71 // pred_fallthru
          _
      $region72: #{tpu_custom_call.1} parent=5 // pred_fallthru
        _
    $region6: #{tpu_custom_call.1} parent=1 // loop_footer
      %s19 = sadd.s32 1, %s15
    $region7: #{tpu_custom_call.1} parent=1 // loop_footer_branch
      %14 = sbr.rel target = $region3
    $region8: #{tpu_custom_call.1} parent=1 // loop_exit
      _
    %951 = vsyncpa [#allocation8], 1
    %s952 = scalar_lea.sflag [#allocation8], 1
    %953 = vsyncpa %s952, 1

</llo_original>
